<compile_context>
chip_gen: v7x
topology: tpu7x:2x2x1
jax: 0.10.0
libtpu: 0.0.40
codegen_flags: <defaults>
</compile_context>

<pallas_src>
import functools
import math

import numpy as np
import jax
import jax.numpy as jnp
from jax import lax
from jax.experimental import pallas as pl
from jax.experimental.pallas import tpu as pltpu


def _round_up(a, b):
    return ((a + b - 1) // b) * b


def _vmem_budget():
    """Returns (tile-sizing VMEM budget, explicit vmem_limit_bytes) for this device."""
    try:
        cap = getattr(pltpu.get_tpu_info(), "vmem_capacity_bytes", None)
    except Exception:
        cap = None
    if not cap:
        cap = 64 << 20                                   # conservative: v7x physical VMEM
    budget = min(int(cap * 0.4), 48 << 20)               # headroom for Mosaic scratch
    limit = int(min(cap - (8 << 20), budget + (16 << 20)))
    return int(budget), limit


def _choose_tiling(n, fsz, num_vars, var_dim, x_itemsize, probs_itemsize,
                   out_itemsize, vmem_budget_bytes):
    """Pick TILE_N (rows of N per grid step) from a per-row VMEM byte estimate."""
    f_lanes = _round_up(fsz, 128)      # (TILE_N, F) block pads F to 128 lanes in VMEM
    v_sub = _round_up(num_vars, 8)
    d_sub = _round_up(var_dim, 8)
    per_row = (
        2 * f_lanes * x_itemsize       # x input block (double buffered)
        + 2 * v_sub * probs_itemsize   # soft_probs output block
        + 2 * d_sub * out_itemsize     # codebook-output block
        + 2 * 8 * 4                    # argmax-index block
        + 5 * v_sub * 4                # live f32 (V, TILE_N) temporaries
        + d_sub * 4                    # f32 matmul result before the store cast
    )
    max_tile = max(128, min((vmem_budget_bytes // per_row) // 128 * 128, 1 << 16))
    n128 = _round_up(max(n, 1), 128)
    if n128 <= max_tile:
        if n128 >= 512:
            # Split into 2 tiles so the "parallel" axis uses both v7x TensorCores.
            tile_n = _round_up(pl.cdiv(n128, 2), 128)
        else:
            tile_n = n128
    else:
        num_t = pl.cdiv(n128, max_tile)
        if num_t % 2:
            num_t += 1                 # even tile count -> clean 2-core split on v7x
        tile_n = _round_up(pl.cdiv(n128, num_t), 128)
    n_pad = _round_up(n128, tile_n)
    return tile_n, n_pad, n_pad // tile_n


def _typer_kernel(x_ref, w_ref, vt_ref,
                  soft_ref, k_ref, out_ref, psum_ref,
                  *, last_valid, num_tiles, mxu_dtype):
    # MXU operands in mxu_dtype (bf16 by default); astype is a no-op if already there.
    x = x_ref[...].astype(mxu_dtype)          # (TILE_N, F)
    w = w_ref[...]                            # (V, F)  row 0 pre-zeroed in wrapper
    vt = vt_ref[...]                          # (D, V)  column 0 pre-zeroed in wrapper

    # logits[v, t] = sum_f W[v, f] * x[t, f] -> (V, TILE_N), N on the lane axis.
    # Contracting the last (lane) dim of both operands is the native transposed-B
    # MXU path — no explicit XLU transpose of the big x tile.
    logits = lax.dot_general(w, x, (((1,), (1,)), ((), ())),
                             preferred_element_type=jnp.float32)
    nv, tn = logits.shape

    # --- softmax over the codebook axis (sublane reduction), f32 math ---
    m = jnp.max(logits, axis=0, keepdims=True)                  # (1, TILE_N)
    soft = jnp.exp(logits - m)
    soft = soft / jnp.sum(soft, axis=0, keepdims=True)          # exact divide (tiny denom)
    soft_ref[...] = soft.astype(soft_ref.dtype)

    # --- hard argmax (first maximal index, matching torch.max tie-break) ---
    ridx = lax.broadcasted_iota(jnp.int32, (nv, tn), 0).astype(jnp.float32)
    k = jnp.min(jnp.where(logits == m, ridx, float(nv)), axis=0, keepdims=True)
    k_ref[...] = k.astype(jnp.int32)

    # --- codebook lookup: (D, V) @ (V, TILE_N) -> (D, TILE_N); one-hot stays in VMEM ---
    hard = (ridx == k).astype(mxu_dtype)
    out_ref[...] = jnp.dot(vt, hard,
                           preferred_element_type=jnp.float32).astype(out_ref.dtype)

    # --- per-tile column sums of soft_probs (perplexity is finished in JAX) ---
    # Padding columns only exist in the last tile; mask only there (row mask, no
    # full (V, TILE_N) iota).
    def store_psum(p):
        psum_ref[...] = jnp.broadcast_to(jnp.sum(p, axis=1, keepdims=True),
                                         psum_ref.shape)

    def store_psum_masked():
        lane = lax.broadcasted_iota(jnp.int32, (1, tn), 1)
        store_psum(jnp.where(lane < last_valid, soft, 0.0))

    if last_valid == tn:            # no padding at all: never mask
        store_psum(soft)
    elif num_tiles == 1:            # single tile: always the masked path
        store_psum_masked()
    else:
        pl.when(pl.program_id(0) == num_tiles - 1)(store_psum_masked)
        pl.when(pl.program_id(0) != num_tiles - 1)(lambda: store_psum(soft))


def gumbel_latent_typer_forward(x, weight_proj_w, vars_, num_vars, *,
                                mxu_dtype=jnp.bfloat16,
                                probs_dtype=jnp.float32,
                                torch_layout=True):
    """Eval/deterministic forward of GumbelLatentTyper.

    x: (B, T, F); weight_proj_w: (num_vars, F) torch Linear layout (no bias);
    vars_: (num_vars, var_dim). Returns a dict mirroring the torch module.
    mxu_dtype: operand dtype for both matmuls (bf16 default; None -> x.dtype).
    torch_layout=False returns kernel-native (V,N)/(D,N) layouts + argmax indices,
    skipping the wrapper transpose / one_hot HBM passes.
    """
    bsz, tsz, fsz = x.shape
    var_dim = vars_.shape[1]
    n = bsz * tsz
    if mxu_dtype is None:
        mxu_dtype = x.dtype
    out_dtype = x.dtype

    # Fold the zero masks into the (tiny, resident) parameters — equivalent because
    # the Linear has no bias:  logits[:, 0] == 0  <=>  weight_proj.weight[0, :] == 0,
    # and vars row 0 zeroed before the codebook matmul.
    w = weight_proj_w.at[0, :].set(0.0).astype(mxu_dtype)            # (V, F)
    vt = jnp.transpose(vars_.at[0, :].set(0.0)).astype(mxu_dtype)    # (D, V)

    x2d = x.reshape(n, fsz)                                          # native dtype, no copy

    vmem_budget, vmem_limit = _vmem_budget()
    tile_n, n_pad, num_tiles = _choose_tiling(
        n, fsz, num_vars, var_dim,
        x_itemsize=np.dtype(x.dtype).itemsize,
        probs_itemsize=np.dtype(probs_dtype).itemsize,
        out_itemsize=np.dtype(out_dtype).itemsize,
        vmem_budget_bytes=vmem_budget)
    if n_pad != n:
        x2d = jnp.pad(x2d, ((0, n_pad - n), (0, 0)))

    last_valid = n - (num_tiles - 1) * tile_n    # valid rows in the last tile (static)

    kernel = functools.partial(_typer_kernel, last_valid=last_valid,
                               num_tiles=num_tiles, mxu_dtype=mxu_dtype)

    soft_t, k_t, out_t, psums = pl.pallas_call(
        kernel,
        grid=(num_tiles,),
        in_specs=[
            pl.BlockSpec((tile_n, fsz), lambda i: (i, 0)),        # x tile
            pl.BlockSpec((num_vars, fsz), lambda i: (0, 0)),      # W (resident)
            pl.BlockSpec((var_dim, num_vars), lambda i: (0, 0)),  # vars^T (resident)
        ],
        out_specs=(
            pl.BlockSpec((num_vars, tile_n), lambda i: (0, i)),   # soft_probs^T
            pl.BlockSpec((1, tile_n), lambda i: (0, i)),          # argmax indices
            pl.BlockSpec((var_dim, tile_n), lambda i: (0, i)),    # codebook output^T
            pl.BlockSpec((num_vars, 128), lambda i: (0, i)),      # per-tile col sums
        ),
        out_shape=(
            jax.ShapeDtypeStruct((num_vars, n_pad), probs_dtype),
            jax.ShapeDtypeStruct((1, n_pad), jnp.int32),
            jax.ShapeDtypeStruct((var_dim, n_pad), out_dtype),
            jax.ShapeDtypeStruct((num_vars, num_tiles * 128), jnp.float32),
        ),
        compiler_params=pltpu.CompilerParams(
            dimension_semantics=("parallel",),
            vmem_limit_bytes=vmem_limit),
    )(x2d, w, vt)

    # Finish the prob-perplexity reduction from the per-tile partial sums (tiny).
    col_sums = psums.reshape(num_vars, num_tiles, 128)[:, :, 0].sum(axis=1)   # (V,)
    avg_probs = (col_sums / n).astype(jnp.float32)
    prob_perplexity = jnp.exp(-jnp.sum(avg_probs * jnp.log(avg_probs + 1e-7)))

    k = k_t[0, :n]                                                   # (N,) int32
    result = {"num_vars": num_vars, "prob_perplexity": prob_perplexity}
    if torch_layout:
        # Torch-facing (N, ...) layout: layout plumbing only (extra HBM passes).
        result["soft_probs"] = jnp.transpose(soft_t)[:n]             # (N, V)
        result["gumbel_probs"] = jax.nn.one_hot(k, num_vars, dtype=out_dtype)
        result["x"] = jnp.transpose(out_t)[:n].reshape(bsz, tsz, var_dim)
    else:
        # Kernel-native layouts: no transpose, no dense one-hot writeback.
        result["soft_probs_t"] = soft_t[:, :n]                       # (V, N)
        result["k"] = k                                              # (N,)
        result["x_t"] = out_t[:, :n]                                 # (D, N)
    return result


if __name__ == "__main__":
    # Small shapes consistent with the module's forward.
    bsz, tsz, dim = 2, 8, 32
    num_vars, var_dim = 16, 8

    key = jax.random.PRNGKey(0)
    kx, kv, kw, kx2 = jax.random.split(key, 4)

    # deterministic parameter init matching the module's __init__:
    #   vars ~ U(-0.5, 0.5); weight_proj.weight ~ kaiming_uniform (linear):
    #   bound = sqrt(3 / fan_in), fan_in = dim
    vars_ = jax.random.uniform(kv, (num_vars, var_dim), jnp.float32,
                               minval=-0.5, maxval=0.5)
    bound = math.sqrt(3.0 / dim)
    weight_proj_w = jax.random.uniform(kw, (num_vars, dim), jnp.float32,
                                       minval=-bound, maxval=bound)
    x = jax.random.normal(kx, (bsz, tsz, dim), jnp.float32)

    result = gumbel_latent_typer_forward(x, weight_proj_w, vars_, num_vars)
    jax.block_until_ready(result)

    n = bsz * tsz
    assert result["x"].shape == (bsz, tsz, var_dim)
    assert result["soft_probs"].shape == (n, num_vars)
    assert result["gumbel_probs"].shape == (n, num_vars)

    # Softmax rows must sum to 1 (exact f32 divide in-kernel).
    row_sums = jnp.sum(result["soft_probs"], axis=-1)
    assert bool(jnp.all(jnp.abs(row_sums - 1.0) < 1e-4))
    assert bool(jnp.all(jnp.sum(result["gumbel_probs"], axis=-1) == 1.0))

    # Codebook output matches the selected (zero-masked) codebook rows; bf16 MXU
    # operands round the codebook values (<= ~2e-3 abs error at |v| <= 0.5).
    k_idx = jnp.argmax(result["gumbel_probs"], axis=-1)
    vars_masked = vars_.at[0, :].set(0.0)
    assert float(jnp.max(jnp.abs(result["x"].reshape(n, var_dim)
                                 - vars_masked[k_idx]))) < 5e-3

    # Cross-check the in-kernel partial-sum perplexity against the returned soft_probs.
    avg_ref = jnp.mean(result["soft_probs"].astype(jnp.float32), axis=0)
    ppl_ref = jnp.exp(-jnp.sum(avg_ref * jnp.log(avg_ref + 1e-7)))
    assert abs(float(result["prob_perplexity"]) - float(ppl_ref)) < 1e-3
    assert 0.0 < float(result["prob_perplexity"]) <= num_vars + 1e-3

    # Second (still small) call exercising the multi-tile grid and the last-tile
    # padding-mask branch: N = 600 -> 2 tiles of 384 rows.
    tsz2 = 300
    x2 = jax.random.normal(kx2, (bsz, tsz2, dim), jnp.float32)
    r2 = gumbel_latent_typer_forward(x2, weight_proj_w, vars_, num_vars)
    jax.block_until_ready(r2)
    n2 = bsz * tsz2
    assert r2["soft_probs"].shape == (n2, num_vars)
    assert bool(jnp.all(jnp.abs(jnp.sum(r2["soft_probs"], axis=-1) - 1.0) < 1e-4))
    k2 = jnp.argmax(r2["gumbel_probs"], axis=-1)
    assert float(jnp.max(jnp.abs(r2["x"].reshape(n2, var_dim)
                                 - vars_masked[k2]))) < 5e-3
    avg2 = jnp.mean(r2["soft_probs"].astype(jnp.float32), axis=0)
    ppl2 = jnp.exp(-jnp.sum(avg2 * jnp.log(avg2 + 1e-7)))
    assert abs(float(r2["prob_perplexity"]) - float(ppl2)) < 1e-3

    print("KERNEL_OK")
</pallas_src>

<mosaic_0001>
module attributes {stable_mosaic.version = 11 : i64} {
  func.func @_typer_kernel(%arg0: i32, %arg1: memref<128x32xf32, #tpu.memory_space<vmem>>, %arg2: memref<16x32xbf16, #tpu.memory_space<vmem>>, %arg3: memref<8x16xbf16, #tpu.memory_space<vmem>>, %arg4: memref<16x128xf32, #tpu.memory_space<vmem>>, %arg5: memref<1x128xi32, #tpu.memory_space<vmem>>, %arg6: memref<8x128xf32, #tpu.memory_space<vmem>>, %arg7: memref<16x128xf32, #tpu.memory_space<vmem>>) attributes {dimension_semantics = [#tpu.dimension_semantics<parallel>], iteration_bounds = array<i64: 1>, scalar_prefetch = 0 : i64, scratch_operands = 0 : i64, tpu.core_type = #tpu.core_type<tc>, window_params = [{transform_indices = @transform_0, window_bounds = array<i64: 128, 32>}, {pipeline_mode = #tpu.pipeline_mode<synchronous>, transform_indices = @transform_1, window_bounds = array<i64: 16, 32>}, {pipeline_mode = #tpu.pipeline_mode<synchronous>, transform_indices = @transform_2, window_bounds = array<i64: 8, 16>}, {transform_indices = @transform_3, window_bounds = array<i64: 16, 128>}, {transform_indices = @transform_4, window_bounds = array<i64: 1, 128>}, {transform_indices = @transform_5, window_bounds = array<i64: 8, 128>}, {transform_indices = @transform_6, window_bounds = array<i64: 16, 128>}]} {
    %c0 = arith.constant 0 : index
    %c0_0 = arith.constant 0 : index
    %0 = vector.load %arg1[%c0, %c0_0] : memref<128x32xf32, #tpu.memory_space<vmem>>, vector<128x32xf32>
    %1 = arith.truncf %0 : vector<128x32xf32> to vector<128x32xbf16>
    %c0_1 = arith.constant 0 : index
    %c0_2 = arith.constant 0 : index
    %2 = vector.load %arg2[%c0_1, %c0_2] : memref<16x32xbf16, #tpu.memory_space<vmem>>, vector<16x32xbf16>
    %c0_3 = arith.constant 0 : index
    %c0_4 = arith.constant 0 : index
    %3 = vector.load %arg3[%c0_3, %c0_4] : memref<8x16xbf16, #tpu.memory_space<vmem>>, vector<8x16xbf16>
    %cst = arith.constant dense<0.000000e+00> : vector<16x128xf32>
    %4 = tpu.matmul %2, %1, %cst {dimension_numbers = #tpu.dot_dimension_numbers<[1], [1], [0], [0], [0, 0, 1, 0], [], []>} : vector<16x32xbf16>, vector<128x32xbf16>, vector<16x128xf32> -> vector<16x128xf32>
    %cst_5 = arith.constant dense<0xFF800000> : vector<128xf32>
    %5 = vector.multi_reduction <maximumf>, %4, %cst_5 [0] : vector<16x128xf32> to vector<128xf32>
    %6 = vector.shape_cast %5 : vector<128xf32> to vector<1x128xf32>
    %7 = vector.broadcast %6 : vector<1x128xf32> to vector<16x128xf32>
    %8 = arith.subf %4, %7 : vector<16x128xf32>
    %9 = math.exp %8 : vector<16x128xf32>
    %cst_6 = arith.constant dense<0.000000e+00> : vector<128xf32>
    %10 = vector.multi_reduction <add>, %9, %cst_6 [0] : vector<16x128xf32> to vector<128xf32>
    %11 = vector.shape_cast %10 : vector<128xf32> to vector<1x128xf32>
    %12 = vector.broadcast %11 : vector<1x128xf32> to vector<16x128xf32>
    %13 = arith.divf %9, %12 : vector<16x128xf32>
    %c0_7 = arith.constant 0 : index
    %c0_8 = arith.constant 0 : index
    %14 = vector.load %arg4[%c0_7, %c0_8] : memref<16x128xf32, #tpu.memory_space<vmem>>, vector<16x128xf32>
    tpu.vector_store %arg4[%c0_7, %c0_8], %13 {strides = array<i32>} : memref<16x128xf32, #tpu.memory_space<vmem>>, vector<16x128xf32>,
    %15 = tpu.iota {dimensions = array<i32: 0>} : vector<16x128xi32>
    %16 = arith.sitofp %15 : vector<16x128xi32> to vector<16x128xf32>
    %17 = vector.broadcast %6 : vector<1x128xf32> to vector<16x128xf32>
    %18 = arith.cmpf oeq, %4, %17 : vector<16x128xf32>
    %cst_9 = arith.constant 1.600000e+01 : f32
    %19 = vector.broadcast %cst_9 : f32 to vector<16x128xf32>
    %20 = arith.select %18, %16, %19 : vector<16x128xi1>, vector<16x128xf32>
    %cst_10 = arith.constant dense<0x7F800000> : vector<128xf32>
    %21 = vector.multi_reduction <minimumf>, %20, %cst_10 [0] : vector<16x128xf32> to vector<128xf32>
    %22 = vector.shape_cast %21 : vector<128xf32> to vector<1x128xf32>
    %23 = arith.fptosi %22 : vector<1x128xf32> to vector<1x128xi32>
    %c0_11 = arith.constant 0 : index
    %c0_12 = arith.constant 0 : index
    %24 = vector.load %arg5[%c0_11, %c0_12] : memref<1x128xi32, #tpu.memory_space<vmem>>, vector<1x128xi32>
    tpu.vector_store %arg5[%c0_11, %c0_12], %23 {strides = array<i32>} : memref<1x128xi32, #tpu.memory_space<vmem>>, vector<1x128xi32>,
    %25 = vector.broadcast %22 : vector<1x128xf32> to vector<16x128xf32>
    %26 = arith.cmpf oeq, %16, %25 : vector<16x128xf32>
    %27 = arith.extui %26 : vector<16x128xi1> to vector<16x128xi32>
    %28 = arith.sitofp %27 : vector<16x128xi32> to vector<16x128xf32>
    %29 = arith.truncf %28 : vector<16x128xf32> to vector<16x128xbf16>
    %cst_13 = arith.constant dense<0.000000e+00> : vector<8x128xf32>
    %30 = tpu.matmul %3, %29, %cst_13 {dimension_numbers = #tpu.dot_dimension_numbers<[1], [0], [0], [1], [0, 0, 1, 1], [], []>} : vector<8x16xbf16>, vector<16x128xbf16>, vector<8x128xf32> -> vector<8x128xf32>
    %c0_14 = arith.constant 0 : index
    %c0_15 = arith.constant 0 : index
    %31 = vector.load %arg6[%c0_14, %c0_15] : memref<8x128xf32, #tpu.memory_space<vmem>>, vector<8x128xf32>
    tpu.vector_store %arg6[%c0_14, %c0_15], %30 {strides = array<i32>} : memref<8x128xf32, #tpu.memory_space<vmem>>, vector<8x128xf32>,
    %32 = tpu.iota {dimensions = array<i32: 1>} : vector<1x128xi32>
    %c16_i32 = arith.constant 16 : i32
    %33 = vector.broadcast %c16_i32 : i32 to vector<1x128xi32>
    %34 = arith.cmpi slt, %32, %33 : vector<1x128xi32>
    %cst_16 = arith.constant 0.000000e+00 : f32
    %35 = vector.shape_cast %34 : vector<1x128xi1> to vector<1x128xi1>
    %36 = vector.broadcast %35 : vector<1x128xi1> to vector<16x128xi1>
    %37 = vector.broadcast %cst_16 : f32 to vector<16x128xf32>
    %38 = arith.select %36, %13, %37 : vector<16x128xi1>, vector<16x128xf32>
    %cst_17 = arith.constant dense<0.000000e+00> : vector<16xf32>
    %39 = vector.multi_reduction <add>, %38, %cst_17 [1] : vector<16x128xf32> to vector<16xf32>
    %40 = vector.shape_cast %39 : vector<16xf32> to vector<16x1xf32>
    %41 = vector.shape_cast %40 : vector<16x1xf32> to vector<16x1xf32>
    %42 = vector.broadcast %41 : vector<16x1xf32> to vector<16x128xf32>
    %c0_18 = arith.constant 0 : index
    %c0_19 = arith.constant 0 : index
    %43 = vector.load %arg7[%c0_18, %c0_19] : memref<16x128xf32, #tpu.memory_space<vmem>>, vector<16x128xf32>
    tpu.vector_store %arg7[%c0_18, %c0_19], %42 {strides = array<i32>} : memref<16x128xf32, #tpu.memory_space<vmem>>, vector<16x128xf32>,
    return
  }
  func.func @transform_0(%arg0: i32) -> (i32, i32) {
    %c0_i32 = arith.constant 0 : i32
    %c0_i32_0 = arith.constant 0 : i32
    return %arg0, %c0_i32 : i32, i32
  }
  func.func @transform_1(%arg0: i32) -> (i32, i32) {
    %c0_i32 = arith.constant 0 : i32
    %c0_i32_0 = arith.constant 0 : i32
    %c0_i32_1 = arith.constant 0 : i32
    return %c0_i32, %c0_i32_0 : i32, i32
  }
  func.func @transform_2(%arg0: i32) -> (i32, i32) {
    %c0_i32 = arith.constant 0 : i32
    %c0_i32_0 = arith.constant 0 : i32
    %c0_i32_1 = arith.constant 0 : i32
    return %c0_i32, %c0_i32_0 : i32, i32
  }
  func.func @transform_3(%arg0: i32) -> (i32, i32) {
    %c0_i32 = arith.constant 0 : i32
    %c0_i32_0 = arith.constant 0 : i32
    return %c0_i32, %arg0 : i32, i32
  }
  func.func @transform_4(%arg0: i32) -> (i32, i32) {
    %c0_i32 = arith.constant 0 : i32
    %c0_i32_0 = arith.constant 0 : i32
    return %c0_i32, %arg0 : i32, i32
  }
  func.func @transform_5(%arg0: i32) -> (i32, i32) {
    %c0_i32 = arith.constant 0 : i32
    %c0_i32_0 = arith.constant 0 : i32
    return %c0_i32, %arg0 : i32, i32
  }
  func.func @transform_6(%arg0: i32) -> (i32, i32) {
    %c0_i32 = arith.constant 0 : i32
    %c0_i32_0 = arith.constant 0 : i32
    return %c0_i32, %arg0 : i32, i32
  }
}

</mosaic_0001>

<llo_original>
// kernel: tpu_custom_call.1
$region0: #{tpu_custom_call.1}
  #allocation0 [shape = 'u32[]', space=smem, size = 0x4, offset = 0x4, fixed_abs, tag = 'smem constant byte address 0x4 - core index']
  #allocation1 [shape = 'u32[144,128]{1,0:T(1,128)}', space=vmem, size = 0x12000, scoped, tag = 'internal scratch']
  %s0 = inlined_call_operand.vmem [shape: f32[128,32], index: 0, kind: input, shape index: {}]
  %s1 = inlined_call_operand.vmem [shape: bf16[16,32], index: 1, kind: input, shape index: {}]
  %s2 = inlined_call_operand.vmem [shape: bf16[8,16], index: 2, kind: input, shape index: {}]
  %s3 = inlined_call_operand.hbm [shape: f32[16,128], index: 3, kind: output, shape index: {0}]
  %s4 = inlined_call_operand.hbm [shape: s32[1,128], index: 4, kind: output, shape index: {1}]
  %s5 = inlined_call_operand.hbm [shape: f32[8,128], index: 5, kind: output, shape index: {2}]
  %s6 = inlined_call_operand.hbm [shape: f32[16,128], index: 6, kind: output, shape index: {3}]
  %7 = xla_tuple %s3, %s4, %s5, %s6
  %s8 = sld [smem:[#allocation0]]
  $region46: #{tpu_custom_call.1} parent=0
    _
  %s10 = ssub.s32 1, %s8
  %s11 = scalar_select 0, %s10, %s8
  $region1: #{tpu_custom_call.1} parent=0
    #allocation2 [shape = 'u8[8192]{0}', space=vmem, size = 0x2000, scoped, tag = 'output window, operand 0, single buffered']
    #allocation3 [shape = 's32[1]{0}', space=sflag, size = 0x4, scoped, tag = 'scoped memory for tpu_custom_call.1']
    #allocation4 [shape = 'u8[512]{0}', space=vmem, size = 0x400, scoped, tag = 'output window, operand 1, single buffered']
    #allocation5 [shape = 's32[1]{0}', space=sflag, size = 0x4, scoped, tag = 'scoped memory for tpu_custom_call.1']
    #allocation6 [shape = 'u8[4096]{0}', space=vmem, size = 0x1000, scoped, tag = 'output window, operand 2, single buffered']
    #allocation7 [shape = 'u8[8192]{0}', space=vmem, size = 0x2000, scoped, tag = 'output window, operand 3, single buffered']
    #allocation8 [shape = 's32[1]{0}', space=sflag, size = 0x4, scoped, tag = 'scoped memory for tpu_custom_call.1']
    %12 = vsyncpa [#allocation3], 0
    %13 = vsyncpa [#allocation5], 0
    %14 = vsyncpa [#allocation8], 0
    // Predicated region
    $region2: #{tpu_custom_call.1} parent=1 // pred_check
      _
    $region3: #{tpu_custom_call.1} parent=1 // pred_check_branch
      %16 = sbr.rel (0) target = $region5
    $region4: #{tpu_custom_call.1} parent=1 // pred_region
      _
    $region5: #{tpu_custom_call.1} parent=1 // pred_fallthru
      _
    // Predicated region
    $region6: #{tpu_custom_call.1} parent=1 // pred_check
      _
    $region7: #{tpu_custom_call.1} parent=1 // pred_check_branch
      %18 = sbr.rel (0) target = $region9
    $region8: #{tpu_custom_call.1} parent=1 // pred_region
      _
    $region9: #{tpu_custom_call.1} parent=1 // pred_fallthru
      _
    // Predicated region
    $region10: #{tpu_custom_call.1} parent=1 // pred_check
      _
    $region11: #{tpu_custom_call.1} parent=1 // pred_check_branch
      %20 = sbr.rel (0) target = $region13
    $region12: #{tpu_custom_call.1} parent=1 // pred_region
      _
    $region13: #{tpu_custom_call.1} parent=1 // pred_fallthru
      _
    %v22 = vld [vmem:[%s0] sm:$0xff]
    %v23 = vld [vmem:[%s0 + $0x8] sm:$0xff]
    %v24 = vld [vmem:[%s0 + $0x10] sm:$0xff]
    %v25 = vld [vmem:[%s0 + $0x18] sm:$0xff]
    %v26 = vld [vmem:[%s0 + $0x20] sm:$0xff]
    %v27 = vld [vmem:[%s0 + $0x28] sm:$0xff]
    %v28 = vld [vmem:[%s0 + $0x30] sm:$0xff]
    %v29 = vld [vmem:[%s0 + $0x38] sm:$0xff]
    %v30 = vld [vmem:[%s0 + $0x40] sm:$0xff]
    %v31 = vld [vmem:[%s0 + $0x48] sm:$0xff]
    %v32 = vld [vmem:[%s0 + $0x50] sm:$0xff]
    %v33 = vld [vmem:[%s0 + $0x58] sm:$0xff]
    %v34 = vld [vmem:[%s0 + $0x60] sm:$0xff]
    %v35 = vld [vmem:[%s0 + $0x68] sm:$0xff]
    %v36 = vld [vmem:[%s0 + $0x70] sm:$0xff]
    %v37 = vld [vmem:[%s0 + $0x78] sm:$0xff]
    %v38 = vpack.c.bf16 %v23, %v22
    %v39 = vpack.c.bf16 %v25, %v24
    %v40 = vpack.c.bf16 %v27, %v26
    %v41 = vpack.c.bf16 %v29, %v28
    %v42 = vpack.c.bf16 %v31, %v30
    %v43 = vpack.c.bf16 %v33, %v32
    %v44 = vpack.c.bf16 %v35, %v34
    %v45 = vpack.c.bf16 %v37, %v36
    %v46 = vld [vmem:[%s1] sm:$0xf]
    %v47 = vld [vmem:[%s1 + $0x4] sm:$0xf]
    %v48 = vld [vmem:[%s2] sm:$0xf]
    %v51 = vunpack.c.l.b16 %v46
    %v52 = vunpack.c.l.b16 %v47
    %v53 = vpack.c.b16 %v52, %v51
    %vm54 = vcmask 261120
    %v56 = vsel %vm54, %v53, 0
    %v59 = vsel %vm54, %v38, 0
    %v62 = vsel %vm54, %v39, 0
    %v65 = vsel %vm54, %v40, 0
    %v68 = vsel %vm54, %v41, 0
    %v71 = vsel %vm54, %v42, 0
    %v74 = vsel %vm54, %v43, 0
    %v77 = vsel %vm54, %v44, 0
    %v80 = vsel %vm54, %v45, 0
    %82 = vmatprep.subr.bf16.mxu0 0
    %83 = vmatpush1.bf16.xpose.msra.mxu0 %v59
    %84 = vmatprep.subr.bf16.mxu0 0
    %85 = vmatpush1.bf16.xpose.msra.mxu0 %v62
    %86 = vmatprep.subr.bf16.mxu0 0
    %87 = vmatpush1.bf16.xpose.msra.mxu0 %v65
    %88 = vmatprep.subr.bf16.mxu0 0
    %89 = vmatpush1.bf16.xpose.msra.mxu0 %v68
    %90 = vmatprep.subr.bf16.mxu0 0
    %91 = vmatpush1.bf16.xpose.msra.mxu0 %v71
    %92 = vmatprep.subr.bf16.mxu0 0
    %93 = vmatpush1.bf16.xpose.msra.mxu0 %v74
    %94 = vmatprep.subr.bf16.mxu0 0
    %95 = vmatpush1.bf16.xpose.msra.mxu0 %v77
    %96 = vmatprep.subr.bf16.mxu0 0
    %97 = vmatpush1.bf16.xpose.msra.mxu0 %v80
    %98 = vmatprep.subr.bf16.mxu0 0
    %99 = vmatpush1.bf16.xpose.msra.mxu0 0
    %100 = vmatprep.subr.bf16.mxu0 0
    %101 = vmatpush1.bf16.xpose.msra.mxu0 0
    %102 = vmatprep.subr.bf16.mxu0 0
    %103 = vmatpush1.bf16.xpose.msra.mxu0 0
    %104 = vmatprep.subr.bf16.mxu0 0
    %105 = vmatpush1.bf16.xpose.msra.mxu0 0
    %106 = vmatprep.subr.bf16.mxu0 0
    %107 = vmatpush1.bf16.xpose.msra.mxu0 0
    %108 = vmatprep.subr.bf16.mxu0 0
    %109 = vmatpush1.bf16.xpose.msra.mxu0 0
    %110 = vmatprep.subr.bf16.mxu0 0
    %111 = vmatpush1.bf16.xpose.msra.mxu0 0
    %112 = vmatprep.subr.bf16.mxu0 0
    %113 = vmatpush1.bf16.xpose.msra.mxu0 0
    %114 = vmatprep.mubr.bf16.mxu0 0
    %115 = vmatmul.mubr.bf16.gmra.mrb[0].mxu0 %v56
    %v116 = vpop.f32.mrb[0].mxu0
    %v117 = vadd.f32 0.0, %v116
    %v118 = vpop.f32.mrb[0].mxu0
    %v119 = vpop.f32.mrb[0].mxu0
    %v120 = vadd.f32 0.0, %v119
    %v121 = vpop.f32.mrb[0].mxu0
    %122 = vdwg.mxu0
    %v123 = vmax.f32 %v117, %v120
    %v124 = vrot.slane %v123, 4
    %v125 = vmax.f32 %v123, %v124
    %v126 = vrot.slane %v125, 2
    %v127 = vmax.f32 %v125, %v126
    %v128 = vrot.slane %v127, 1
    %v129 = vmax.f32 %v127, %v128
    %v130 = vsub.f32 %v117, %v129
    %v131 = vsub.f32 %v120, %v129
    %v132 = vmul.f32 %v130, 1.442695
    %v133 = vpow.pop %v132
    %v134 = vmul.f32 %v131, 1.442695
    %v135 = vpow.pop %v134
    %v136 = vadd.f32 %v133, %v135
    %v137 = vrot.slane %v136, 4
    %v138 = vadd.f32 %v136, %v137
    %v139 = vrot.slane %v138, 2
    %v140 = vadd.f32 %v138, %v139
    %v141 = vrot.slane %v140, 1
    %v142 = vadd.f32 %v140, %v141
    %v143 = vrcp.pop %v142
    %v144 = vmul.f32 %v133, %v143
    %v145 = vmul.f32 %v135, %v143
    %146 = vst [vmem:[#allocation2] sm:$0xff] %v144
    %147 = vst [vmem:[#allocation2 + $0x8] sm:$0xff] %v145
    %v148 = vlaneseq
    %v149 = vshrl.u32 %v148, 7
    %v150 = vadd.s32 %v149, 8
    %v151 = vcvt.s32.f32 %v149
    %v152 = vcvt.s32.f32 %v150
    %vm153 = vcmp.eq.f32.partialorder %v117, %v129
    %vm154 = vcmp.eq.f32.partialorder %v120, %v129
    %v155 = vsel %vm153, %v151, 16.0
    %v156 = vsel %vm154, %v152, 16.0
    %v157 = vmin.f32 %v155, %v156
    %v158 = vrot.slane %v157, 4
    %v159 = vmin.f32 %v157, %v158
    %v160 = vrot.slane %v159, 2
    %v161 = vmin.f32 %v159, %v160
    %v162 = vrot.slane %v161, 1
    %v163 = vmin.f32 %v161, %v162
    %v164 = vcvt.f32.s32.to.zero.pseudo %v163
    %165 = vst [vmem:[#allocation4] sm:$0x1] %v164
    %vm166 = vcmp.eq.f32.partialorder %v151, %v163
    %vm167 = vcmp.eq.f32.partialorder %v152, %v163
    %v168 = vsel %vm166, 1, 0
    %v169 = vsel %vm167, 1, 0
    %v170 = vcvt.s32.f32 %v168
    %v171 = vcvt.s32.f32 %v169
    %v172 = vpack.c.bf16 %v171, %v170
    %vm173 = vcmask 130048
    %v175 = vsel %vm173, %v48, 0
    %177 = vmatprep.subr.bf16.mxu0 0
    %178 = vmatpush1.bf16.msra.mxu0 %v172
    %179 = vmatprep.subr.bf16.mxu0 0
    %180 = vmatpush1.bf16.msra.mxu0 0
    %181 = vmatprep.subr.bf16.mxu0 0
    %182 = vmatpush1.bf16.msra.mxu0 0
    %183 = vmatprep.subr.bf16.mxu0 0
    %184 = vmatpush1.bf16.msra.mxu0 0
    %185 = vmatprep.subr.bf16.mxu0 0
    %186 = vmatpush1.bf16.msra.mxu0 0
    %187 = vmatprep.subr.bf16.mxu0 0
    %188 = vmatpush1.bf16.msra.mxu0 0
    %189 = vmatprep.subr.bf16.mxu0 0
    %190 = vmatpush1.bf16.msra.mxu0 0
    %191 = vmatprep.subr.bf16.mxu0 0
    %192 = vmatpush1.bf16.msra.mxu0 0
    %193 = vmatprep.subr.bf16.mxu0 0
    %194 = vmatpush1.bf16.msra.mxu0 0
    %195 = vmatprep.subr.bf16.mxu0 0
    %196 = vmatpush1.bf16.msra.mxu0 0
    %197 = vmatprep.subr.bf16.mxu0 0
    %198 = vmatpush1.bf16.msra.mxu0 0
    %199 = vmatprep.subr.bf16.mxu0 0
    %200 = vmatpush1.bf16.msra.mxu0 0
    %201 = vmatprep.subr.bf16.mxu0 0
    %202 = vmatpush1.bf16.msra.mxu0 0
    %203 = vmatprep.subr.bf16.mxu0 0
    %204 = vmatpush1.bf16.msra.mxu0 0
    %205 = vmatprep.subr.bf16.mxu0 0
    %206 = vmatpush1.bf16.msra.mxu0 0
    %207 = vmatprep.subr.bf16.mxu0 0
    %208 = vmatpush1.bf16.msra.mxu0 0
    %209 = vmatprep.mubr.bf16.mxu0 0
    %210 = vmatmul.mubr.bf16.gmra.mrb[0].mxu0 %v175
    %v211 = vpop.f32.mrb[0].mxu0
    %v212 = vadd.f32 0.0, %v211
    %v213 = vpop.f32.mrb[0].mxu0
    %v214 = vpop.f32.mrb[0].mxu0
    %v215 = vpop.f32.mrb[0].mxu0
    %216 = vdwg.mxu0
    %217 = vst [vmem:[#allocation6] sm:$0xff] %v212
    %v218 = vlaneseq
    %v219 = vand.u32 %v218, 127
    %vm220 = vcmp.lt.s32.totalorder %v219, 16
    %v221 = vsel %vm220, 1, 0
    %vm222 = vcmp.eq.s32.totalorder %v221, 1
    %v223 = vsel %vm222, %v144, 0.0
    %v224 = vsel %vm222, %v145, 0.0
    %225 = vadd.xlane.f32.xlu0 %v223
    %v226 = vpop.xlane.xlu0 %225
    %227 = vadd.xlane.f32.xlu0 %v224
    %v228 = vpop.xlane.xlu0 %227
    %229 = vst [vmem:[#allocation7] sm:$0xff] %v226
    %230 = vst [vmem:[#allocation7 + $0x8] sm:$0xff] %v228
    // Predicated region
    $region14: #{tpu_custom_call.1} parent=1 // pred_check
      _
    $region15: #{tpu_custom_call.1} parent=1 // pred_check_branch
      %232 = sbr.rel (0) target = $region17
    $region16: #{tpu_custom_call.1} parent=1 // pred_region
      %s234 = ssub.s32 256, 256
      %235 = vsyncadd [#allocation3], %s234
      %s236 = sshll.u32 [#allocation2], 4
      %s237 = int_to_ptr.vmem [resolvable:$true] %s236
      %242 = dma.vmem_to_hbm [thread:$0]  %s237, 256, %s3, [#allocation3], 128, 128, 8
    $region17: #{tpu_custom_call.1} parent=1 // pred_fallthru
      _
    // Predicated region
    $region18: #{tpu_custom_call.1} parent=1 // pred_check
      _
    $region19: #{tpu_custom_call.1} parent=1 // pred_check_branch
      %244 = sbr.rel (0) target = $region21
    $region20: #{tpu_custom_call.1} parent=1 // pred_region
      %s246 = ssub.s32 16, 16
      %247 = vsyncadd [#allocation5], %s246
      %s249 = sshll.u32 [#allocation4], 4
      %s250 = int_to_ptr.vmem [resolvable:$true] %s249
      %252 = dma.vmem_to_hbm [thread:$0]  %s250, 16, %s4, [#allocation5]
    $region21: #{tpu_custom_call.1} parent=1 // pred_fallthru
      _
    // Predicated region
    $region22: #{tpu_custom_call.1} parent=1 // pred_check
      _
    $region23: #{tpu_custom_call.1} parent=1 // pred_check_branch
      %254 = sbr.rel (0) target = $region25
    $region24: #{tpu_custom_call.1} parent=1 // pred_region
      %s256 = ssub.s32 128, 128
      %257 = vsyncadd [#allocation5], %s256
      %s259 = sshll.u32 [#allocation6], 4
      %s260 = int_to_ptr.vmem [resolvable:$true] %s259
      %262 = dma.vmem_to_hbm [thread:$0]  %s260, 128, %s5, [#allocation5]
    $region25: #{tpu_custom_call.1} parent=1 // pred_fallthru
      _
    // Predicated region
    $region26: #{tpu_custom_call.1} parent=1 // pred_check
      _
    $region27: #{tpu_custom_call.1} parent=1 // pred_check_branch
      %264 = sbr.rel (0) target = $region29
    $region28: #{tpu_custom_call.1} parent=1 // pred_region
      %s266 = ssub.s32 256, 256
      %267 = vsyncadd [#allocation8], %s266
      %s268 = sshll.u32 [#allocation7], 4
      %s269 = int_to_ptr.vmem [resolvable:$true] %s268
      %274 = dma.vmem_to_hbm [thread:$0]  %s269, 256, %s6, [#allocation8], 128, 128, 8
    $region29: #{tpu_custom_call.1} parent=1 // pred_fallthru
      _
    // Predicated region
    $region30: #{tpu_custom_call.1} parent=1 // pred_check
      _
    $region31: #{tpu_custom_call.1} parent=1 // pred_check_branch
      %276 = sbr.rel (0) target = $region33
    $region32: #{tpu_custom_call.1} parent=1 // pred_region
      %277 = dma.done [#allocation3], 256
    $region33: #{tpu_custom_call.1} parent=1 // pred_fallthru
      _
    // Predicated region
    $region34: #{tpu_custom_call.1} parent=1 // pred_check
      _
    $region35: #{tpu_custom_call.1} parent=1 // pred_check_branch
      %279 = sbr.rel (0) target = $region37
    $region36: #{tpu_custom_call.1} parent=1 // pred_region
      %280 = dma.done [#allocation5], 16
    $region37: #{tpu_custom_call.1} parent=1 // pred_fallthru
      _
    // Predicated region
    $region38: #{tpu_custom_call.1} parent=1 // pred_check
      _
    $region39: #{tpu_custom_call.1} parent=1 // pred_check_branch
      %282 = sbr.rel (0) target = $region41
    $region40: #{tpu_custom_call.1} parent=1 // pred_region
      %283 = dma.done [#allocation5], 128
    $region41: #{tpu_custom_call.1} parent=1 // pred_fallthru
      _
    // Predicated region
    $region42: #{tpu_custom_call.1} parent=1 // pred_check
      _
    $region43: #{tpu_custom_call.1} parent=1 // pred_check_branch
      %285 = sbr.rel (0) target = $region45
    $region44: #{tpu_custom_call.1} parent=1 // pred_region
      %286 = dma.done [#allocation8], 256
    $region45: #{tpu_custom_call.1} parent=1 // pred_fallthru
      _
    %287 = vsyncpa [#allocation3], 1
    %288 = vsyncpa [#allocation5], 1
    %289 = vsyncpa [#allocation8], 1

</llo_original>
